<compile_context>
chip_gen: v7x
topology: tpu7x:2x2x1
jax: 0.10.0
libtpu: 0.0.40
codegen_flags: <defaults>
</compile_context>

<pallas_src>
import jax
import jax.numpy as jnp
from jax.experimental import pallas as pl
from jax.experimental.pallas import tpu as pltpu


def _round_up(x, m):
    return ((x + m - 1) // m) * m


def _device_kind():
    try:
        return jax.devices()[0].device_kind.lower()
    except Exception:
        return ""


def _attn_kernel(q_ref, k_ref, v_ref, o_ref, a_ref=None):
    # q_ref: (BB, 1, D), k_ref: (BB, T, D), v_ref: (BB, T, Dv)
    q = q_ref[...]                                   # (BB, 1, D)
    k = k_ref[...]                                   # (BB, T, D)

    # energy[b, t] = sum_d k[b, t, d] * q[b, 0, d]
    # Multiply in the input dtype, accumulate in f32; keepdims keeps T on the
    # sublane axis so the softmax and the broadcast against v need no relayout.
    energy = jnp.sum(k * q, axis=-1, keepdims=True, dtype=jnp.float32)  # (BB,T,1)

    # Softmax over T (sublane axis), f32 math; reciprocal on the (idle) EUP.
    m = jnp.max(energy, axis=1, keepdims=True)                          # (BB,1,1)
    p = jnp.exp(energy - m)                                             # (BB,T,1)
    denom = jnp.sum(p, axis=1, keepdims=True)                           # (BB,1,1)
    attn = p * pl.reciprocal(denom, approx=True)                        # (BB,T,1)

    # Load v only now: shortens the live range of the largest tile.
    v = v_ref[...]                                                      # (BB,T,Dv)
    out = jnp.sum(attn.astype(v.dtype) * v, axis=1, dtype=jnp.float32)  # (BB,Dv)

    o_ref[...] = out.astype(o_ref.dtype)
    if a_ref is not None:
        a_ref[...] = jnp.squeeze(attn, axis=-1).astype(a_ref.dtype)


def attention(query, key, value, lens=None, *, block_b=None,
              return_attention=True):
    """Pallas equivalent of Attention.forward. `lens` is unused (as in torch)."""
    B, T, D = key.shape
    Dv = value.shape[-1]
    assert query.shape == (B, D)
    out_dtype = query.dtype
    itemsize = jnp.dtype(query.dtype).itemsize

    kind = _device_kind()
    is_v7 = "v7" in kind
    # Per-TensorCore VMEM: v7x has 64 MiB physical, v5e/v6e have 128 MiB.
    budget = (24 << 20) if is_v7 else (64 << 20)     # tile-sizing target
    phys_cap = (48 << 20) if is_v7 else (100 << 20)  # ceiling for vmem_limit

    b8 = _round_up(B, 8)

    # Conservative per-batch-row VMEM footprint: double-buffered input tiles +
    # double-buffered output tiles + f32 temporaries (broadcast products,
    # softmax intermediates).
    in_bytes = 2 * (D + T * D + T * Dv) * itemsize
    out_bytes = 2 * (Dv + T) * itemsize
    tmp_bytes = (T * D + T * Dv + 4 * T + 2 * Dv) * 4
    per_row = in_bytes + out_bytes + tmp_bytes

    if block_b is None:
        bb = max(8, (budget // per_row) // 8 * 8)
        if is_v7 and b8 >= 32:
            # >=4 grid steps (>=2 per TensorCore) so both cores get work and
            # DMA overlaps compute; blocks otherwise as large as VMEM permits.
            bb = min(bb, max(8, (b8 // 4) // 8 * 8))
        block_b = min(bb, b8)
    block_b = max(8, _round_up(block_b, 8))

    # TODO(synk): for very large T (per-row K/V slab too big even at block_b=8),
    # add a second grid axis over T with an online-softmax accumulator.

    # Pad batch to a multiple of block_b; zero rows are harmless (uniform
    # softmax over zero energy, zero output) and sliced off afterwards.
    B_pad = _round_up(max(B, block_b), block_b)
    query3 = query.reshape(B, 1, D)
    if B_pad != B:
        pad = B_pad - B
        query3 = jnp.pad(query3, ((0, pad), (0, 0), (0, 0)))
        key = jnp.pad(key, ((0, pad), (0, 0), (0, 0)))
        value = jnp.pad(value, ((0, pad), (0, 0), (0, 0)))

    est = per_row * block_b + (1 << 20)
    vmem_limit = int(min(phys_cap, max(32 << 20, est * 5 // 4)))

    out_specs = (pl.BlockSpec((block_b, Dv), lambda b: (b, 0)),)
    out_shape = (jax.ShapeDtypeStruct((B_pad, Dv), out_dtype),)
    if return_attention:
        out_specs = out_specs + (pl.BlockSpec((block_b, T), lambda b: (b, 0)),)
        out_shape = out_shape + (jax.ShapeDtypeStruct((B_pad, T), out_dtype),)

    results = pl.pallas_call(
        _attn_kernel,
        grid=(B_pad // block_b,),
        in_specs=[
            pl.BlockSpec((block_b, 1, D), lambda b: (b, 0, 0)),
            pl.BlockSpec((block_b, T, D), lambda b: (b, 0, 0)),
            pl.BlockSpec((block_b, T, Dv), lambda b: (b, 0, 0)),
        ],
        out_specs=out_specs,
        out_shape=out_shape,
        compiler_params=pltpu.CompilerParams(
            dimension_semantics=("parallel",),
            vmem_limit_bytes=vmem_limit,
        ),
    )(query3, key, value)

    if return_attention:
        out, attn = results
        return out[:B], attn[:B]
    (out,) = results
    return out[:B], None


def _attention_ref(query, key, value):
    energy = jnp.einsum("btd,bd->bt", key, query)
    attn = jax.nn.softmax(energy, axis=1)
    out = jnp.einsum("bt,btd->bd", attn, value)
    return out, attn


if __name__ == "__main__":
    B, T, D, Dv = 2, 8, 32, 32
    k0 = jax.random.PRNGKey(0)
    kq, kk, kv = jax.random.split(k0, 3)
    query = jax.random.normal(kq, (B, D), dtype=jnp.float32)
    key = jax.random.normal(kk, (B, T, D), dtype=jnp.float32)
    value = jax.random.normal(kv, (B, T, Dv), dtype=jnp.float32)
    lens = jnp.full((B,), T, dtype=jnp.int32)  # unused, mirrors torch signature

    out, attn = attention(query, key, value, lens)
    jax.block_until_ready((out, attn))

    out_ref, attn_ref = _attention_ref(query, key, value)
    assert out.shape == (B, Dv) and attn.shape == (B, T)
    # Tolerance relaxed slightly vs 1e-5: softmax denominator uses the EUP
    # approximate reciprocal (pl.reciprocal(approx=True)).
    assert jnp.allclose(out, out_ref, atol=2e-3, rtol=2e-3)
    assert jnp.allclose(attn, attn_ref, atol=2e-3, rtol=2e-3)

    print("KERNEL_OK")
</pallas_src>

<mosaic_0001>
module attributes {stable_mosaic.version = 11 : i64} {
  func.func @_attn_kernel(%arg0: i32, %arg1: memref<8x1x32xf32, #tpu.memory_space<vmem>>, %arg2: memref<8x8x32xf32, #tpu.memory_space<vmem>>, %arg3: memref<8x8x32xf32, #tpu.memory_space<vmem>>, %arg4: memref<8x32xf32, #tpu.memory_space<vmem>>, %arg5: memref<8x8xf32, #tpu.memory_space<vmem>>) attributes {dimension_semantics = [#tpu.dimension_semantics<parallel>], iteration_bounds = array<i64: 1>, scalar_prefetch = 0 : i64, scratch_operands = 0 : i64, tpu.core_type = #tpu.core_type<tc>, window_params = [{transform_indices = @transform_0, window_bounds = array<i64: 8, 1, 32>}, {transform_indices = @transform_1, window_bounds = array<i64: 8, 8, 32>}, {transform_indices = @transform_2, window_bounds = array<i64: 8, 8, 32>}, {transform_indices = @transform_3, window_bounds = array<i64: 8, 32>}, {transform_indices = @transform_4, window_bounds = array<i64: 8, 8>}]} {
    %c0 = arith.constant 0 : index
    %c0_0 = arith.constant 0 : index
    %c0_1 = arith.constant 0 : index
    %0 = vector.load %arg1[%c0, %c0_0, %c0_1] : memref<8x1x32xf32, #tpu.memory_space<vmem>>, vector<8x1x32xf32>
    %c0_2 = arith.constant 0 : index
    %c0_3 = arith.constant 0 : index
    %c0_4 = arith.constant 0 : index
    %1 = vector.load %arg2[%c0_2, %c0_3, %c0_4] : memref<8x8x32xf32, #tpu.memory_space<vmem>>, vector<8x8x32xf32>
    %2 = vector.broadcast %0 : vector<8x1x32xf32> to vector<8x8x32xf32>
    %3 = arith.mulf %1, %2 : vector<8x8x32xf32>
    %cst = arith.constant dense<0.000000e+00> : vector<8x8xf32>
    %4 = vector.multi_reduction <add>, %3, %cst [2] : vector<8x8x32xf32> to vector<8x8xf32>
    %5 = vector.shape_cast %4 : vector<8x8xf32> to vector<8x8x1xf32>
    %cst_5 = arith.constant dense<0xFF800000> : vector<8x1xf32>
    %6 = vector.multi_reduction <maximumf>, %5, %cst_5 [1] : vector<8x8x1xf32> to vector<8x1xf32>
    %7 = vector.shape_cast %6 : vector<8x1xf32> to vector<8x1x1xf32>
    %8 = vector.broadcast %7 : vector<8x1x1xf32> to vector<8x8x1xf32>
    %9 = arith.subf %5, %8 : vector<8x8x1xf32>
    %10 = math.exp %9 : vector<8x8x1xf32>
    %cst_6 = arith.constant dense<0.000000e+00> : vector<8x1xf32>
    %11 = vector.multi_reduction <add>, %10, %cst_6 [1] : vector<8x8x1xf32> to vector<8x1xf32>
    %12 = vector.shape_cast %11 : vector<8x1xf32> to vector<8x1x1xf32>
    %13 = tpu.reciprocal %12 {approx = true} : vector<8x1x1xf32> -> vector<8x1x1xf32>
    %14 = vector.broadcast %13 : vector<8x1x1xf32> to vector<8x8x1xf32>
    %15 = arith.mulf %10, %14 : vector<8x8x1xf32>
    %c0_7 = arith.constant 0 : index
    %c0_8 = arith.constant 0 : index
    %c0_9 = arith.constant 0 : index
    %16 = vector.load %arg3[%c0_7, %c0_8, %c0_9] : memref<8x8x32xf32, #tpu.memory_space<vmem>>, vector<8x8x32xf32>
    %17 = vector.broadcast %15 : vector<8x8x1xf32> to vector<8x8x32xf32>
    %18 = arith.mulf %17, %16 : vector<8x8x32xf32>
    %cst_10 = arith.constant dense<0.000000e+00> : vector<8x32xf32>
    %19 = vector.multi_reduction <add>, %18, %cst_10 [1] : vector<8x8x32xf32> to vector<8x32xf32>
    %c0_11 = arith.constant 0 : index
    %c0_12 = arith.constant 0 : index
    %20 = vector.load %arg4[%c0_11, %c0_12] : memref<8x32xf32, #tpu.memory_space<vmem>>, vector<8x32xf32>
    tpu.vector_store %arg4[%c0_11, %c0_12], %19 {strides = array<i32>} : memref<8x32xf32, #tpu.memory_space<vmem>>, vector<8x32xf32>,
    %21 = vector.shape_cast %15 : vector<8x8x1xf32> to vector<8x8xf32>
    %c0_13 = arith.constant 0 : index
    %c0_14 = arith.constant 0 : index
    %22 = vector.load %arg5[%c0_13, %c0_14] : memref<8x8xf32, #tpu.memory_space<vmem>>, vector<8x8xf32>
    tpu.vector_store %arg5[%c0_13, %c0_14], %21 {strides = array<i32>} : memref<8x8xf32, #tpu.memory_space<vmem>>, vector<8x8xf32>,
    return
  }
  func.func @transform_0(%arg0: i32) -> (i32, i32, i32) {
    %c0_i32 = arith.constant 0 : i32
    %c0_i32_0 = arith.constant 0 : i32
    %c0_i32_1 = arith.constant 0 : i32
    return %arg0, %c0_i32, %c0_i32_0 : i32, i32, i32
  }
  func.func @transform_1(%arg0: i32) -> (i32, i32, i32) {
    %c0_i32 = arith.constant 0 : i32
    %c0_i32_0 = arith.constant 0 : i32
    %c0_i32_1 = arith.constant 0 : i32
    return %arg0, %c0_i32, %c0_i32_0 : i32, i32, i32
  }
  func.func @transform_2(%arg0: i32) -> (i32, i32, i32) {
    %c0_i32 = arith.constant 0 : i32
    %c0_i32_0 = arith.constant 0 : i32
    %c0_i32_1 = arith.constant 0 : i32
    return %arg0, %c0_i32, %c0_i32_0 : i32, i32, i32
  }
  func.func @transform_3(%arg0: i32) -> (i32, i32) {
    %c0_i32 = arith.constant 0 : i32
    %c0_i32_0 = arith.constant 0 : i32
    return %arg0, %c0_i32 : i32, i32
  }
  func.func @transform_4(%arg0: i32) -> (i32, i32) {
    %c0_i32 = arith.constant 0 : i32
    %c0_i32_0 = arith.constant 0 : i32
    return %arg0, %c0_i32 : i32, i32
  }
}

</mosaic_0001>

<llo_original>
// kernel: tpu_custom_call.1
$region0: #{tpu_custom_call.1}
  #allocation0 [shape = 'u32[]', space=smem, size = 0x4, offset = 0x4, fixed_abs, tag = 'smem constant byte address 0x4 - core index']
  #allocation1 [shape = 'u32[144,128]{1,0:T(1,128)}', space=vmem, size = 0x12000, scoped, tag = 'internal scratch']
  %s0 = inlined_call_operand.hbm [shape: f32[8,1,32], index: 0, kind: input, shape index: {}]
  %s1 = inlined_call_operand.hbm [shape: f32[8,8,32], index: 1, kind: input, shape index: {}]
  %s2 = inlined_call_operand.hbm [shape: f32[8,8,32], index: 2, kind: input, shape index: {}]
  %s3 = inlined_call_operand.hbm [shape: f32[8,32], index: 3, kind: output, shape index: {0}]
  %s4 = inlined_call_operand.hbm [shape: f32[8,8], index: 4, kind: output, shape index: {1}]
  %5 = xla_tuple %s3, %s4
  %s6 = sld [smem:[#allocation0]]
  $region42: #{tpu_custom_call.1} parent=0
    _
  %s8 = ssub.s32 1, %s6
  %s9 = scalar_select 0, %s8, %s6
  $region1: #{tpu_custom_call.1} parent=0
    #allocation2 [shape = 'u8[4096]{0}', space=vmem, size = 0x1000, scoped, tag = 'input window, operand 0, single buffered']
    #allocation3 [shape = 's32[1]{0}', space=sflag, size = 0x4, scoped, tag = 'scoped memory for tpu_custom_call.1']
    #allocation4 [shape = 's32[1]{0}', space=sflag, size = 0x4, scoped, tag = 'scoped memory for tpu_custom_call.1']
    #allocation5 [shape = 'u8[32768]{0}', space=vmem, size = 0x8000, scoped, tag = 'input window, operand 1, single buffered']
    #allocation6 [shape = 's32[1]{0}', space=sflag, size = 0x4, scoped, tag = 'scoped memory for tpu_custom_call.1']
    #allocation7 [shape = 'u8[32768]{0}', space=vmem, size = 0x8000, scoped, tag = 'input window, operand 2, single buffered']
    #allocation8 [shape = 'u8[4096]{0}', space=vmem, size = 0x1000, scoped, tag = 'output window, operand 0, single buffered']
    #allocation9 [shape = 'u8[4096]{0}', space=vmem, size = 0x1000, scoped, tag = 'output window, operand 1, single buffered']
    #allocation10 [shape = 's32[1]{0}', space=sflag, size = 0x4, scoped, tag = 'scoped memory for tpu_custom_call.1']
    %10 = vsyncpa [#allocation3], 0
    %11 = vsyncpa [#allocation6], 0
    %12 = vsyncpa [#allocation4], 0
    %13 = vsyncpa [#allocation10], 0
    // Predicated region
    $region2: #{tpu_custom_call.1} parent=1 // pred_check
      _
    $region3: #{tpu_custom_call.1} parent=1 // pred_check_branch
      %15 = sbr.rel (0) target = $region5
    $region4: #{tpu_custom_call.1} parent=1 // pred_region
      %s17 = ssub.s32 128, 128
      %18 = vsyncadd [#allocation3], %s17
      %s19 = sshll.u32 [#allocation2], 4
      %s20 = int_to_ptr.vmem [resolvable:$true] %s19
      %25 = dma.hbm_to_vmem [thread:$0]  %s0, 128, %s20, [#allocation3], 16, 16, 1
    $region5: #{tpu_custom_call.1} parent=1 // pred_fallthru
      _
    // Predicated region
    $region6: #{tpu_custom_call.1} parent=1 // pred_check
      _
    $region7: #{tpu_custom_call.1} parent=1 // pred_check_branch
      %27 = sbr.rel (0) target = $region9
    $region8: #{tpu_custom_call.1} parent=1 // pred_region
      %s29 = ssub.s32 1024, 1024
      %30 = vsyncadd [#allocation6], %s29
      %s31 = sshll.u32 [#allocation5], 4
      %s32 = int_to_ptr.vmem [resolvable:$true] %s31
      %37 = dma.hbm_to_vmem [thread:$0]  %s1, 1024, %s32, [#allocation6], 128, 128, 8
    $region9: #{tpu_custom_call.1} parent=1 // pred_fallthru
      _
    // Predicated region
    $region10: #{tpu_custom_call.1} parent=1 // pred_check
      _
    $region11: #{tpu_custom_call.1} parent=1 // pred_check_branch
      %39 = sbr.rel (0) target = $region13
    $region12: #{tpu_custom_call.1} parent=1 // pred_region
      %s41 = ssub.s32 1024, 1024
      %42 = vsyncadd [#allocation6], %s41
      %s43 = sshll.u32 [#allocation7], 4
      %s44 = int_to_ptr.vmem [resolvable:$true] %s43
      %49 = dma.hbm_to_vmem [thread:$0]  %s2, 1024, %s44, [#allocation6], 128, 128, 8
    $region13: #{tpu_custom_call.1} parent=1 // pred_fallthru
      _
    // Predicated region
    $region14: #{tpu_custom_call.1} parent=1 // pred_check
      _
    $region15: #{tpu_custom_call.1} parent=1 // pred_check_branch
      %51 = sbr.rel (0) target = $region17
    $region16: #{tpu_custom_call.1} parent=1 // pred_region
      %52 = dma.done [#allocation3], 128
    $region17: #{tpu_custom_call.1} parent=1 // pred_fallthru
      _
    // Predicated region
    $region18: #{tpu_custom_call.1} parent=1 // pred_check
      _
    $region19: #{tpu_custom_call.1} parent=1 // pred_check_branch
      %54 = sbr.rel (0) target = $region21
    $region20: #{tpu_custom_call.1} parent=1 // pred_region
      %55 = dma.done [#allocation6], 1024
    $region21: #{tpu_custom_call.1} parent=1 // pred_fallthru
      _
    // Predicated region
    $region22: #{tpu_custom_call.1} parent=1 // pred_check
      _
    $region23: #{tpu_custom_call.1} parent=1 // pred_check_branch
      %57 = sbr.rel (0) target = $region25
    $region24: #{tpu_custom_call.1} parent=1 // pred_region
      %58 = dma.done [#allocation6], 1024
    $region25: #{tpu_custom_call.1} parent=1 // pred_fallthru
      _
    %v59 = vld [vmem:[#allocation2] sm:$0x1]
    %v60 = vld [vmem:[#allocation2 + $0x1] sm:$0x1]
    %v61 = vld [vmem:[#allocation2 + $0x2] sm:$0x1]
    %v62 = vld [vmem:[#allocation2 + $0x3] sm:$0x1]
    %v63 = vld [vmem:[#allocation2 + $0x4] sm:$0x1]
    %v64 = vld [vmem:[#allocation2 + $0x5] sm:$0x1]
    %v65 = vld [vmem:[#allocation2 + $0x6] sm:$0x1]
    %v66 = vld [vmem:[#allocation2 + $0x7] sm:$0x1]
    %v67 = vld [vmem:[#allocation5] sm:$0xff]
    %v68 = vld [vmem:[#allocation5 + $0x8] sm:$0xff]
    %v69 = vld [vmem:[#allocation5 + $0x10] sm:$0xff]
    %v70 = vld [vmem:[#allocation5 + $0x18] sm:$0xff]
    %v71 = vld [vmem:[#allocation5 + $0x20] sm:$0xff]
    %v72 = vld [vmem:[#allocation5 + $0x28] sm:$0xff]
    %v73 = vld [vmem:[#allocation5 + $0x30] sm:$0xff]
    %v74 = vld [vmem:[#allocation5 + $0x38] sm:$0xff]
    %v83 = vlaneseq
    %v84 = vshrl.u32 %v83, 7
    %v85 = vsub.s32 0, %v84
    %v86 = vrot.slane %v59, %v85
    %v87 = vlaneseq
    %v88 = vshrl.u32 %v87, 7
    %v89 = vsub.s32 0, %v88
    %v90 = vrot.slane %v60, %v89
    %v91 = vlaneseq
    %v92 = vshrl.u32 %v91, 7
    %v93 = vsub.s32 0, %v92
    %v94 = vrot.slane %v61, %v93
    %v95 = vlaneseq
    %v96 = vshrl.u32 %v95, 7
    %v97 = vsub.s32 0, %v96
    %v98 = vrot.slane %v62, %v97
    %v99 = vlaneseq
    %v100 = vshrl.u32 %v99, 7
    %v101 = vsub.s32 0, %v100
    %v102 = vrot.slane %v63, %v101
    %v103 = vlaneseq
    %v104 = vshrl.u32 %v103, 7
    %v105 = vsub.s32 0, %v104
    %v106 = vrot.slane %v64, %v105
    %v107 = vlaneseq
    %v108 = vshrl.u32 %v107, 7
    %v109 = vsub.s32 0, %v108
    %v110 = vrot.slane %v65, %v109
    %v111 = vlaneseq
    %v112 = vshrl.u32 %v111, 7
    %v113 = vsub.s32 0, %v112
    %v114 = vrot.slane %v66, %v113
    %v123 = vmul.f32 %v67, %v86
    %v124 = vmul.f32 %v68, %v90
    %v125 = vmul.f32 %v69, %v94
    %v126 = vmul.f32 %v70, %v98
    %v127 = vmul.f32 %v71, %v102
    %v128 = vmul.f32 %v72, %v106
    %v129 = vmul.f32 %v73, %v110
    %v130 = vmul.f32 %v74, %v114
    %vm131 = vcmask 261120
    %v132 = vsel %vm131, %v123, 0.0
    %133 = vadd.xlane.f32.xlu0 %v132
    %v134 = vpop.xlane.xlu0 %133
    %v135 = vsel %vm131, %v124, 0.0
    %136 = vadd.xlane.f32.xlu0 %v135
    %v137 = vpop.xlane.xlu0 %136
    %v138 = vsel %vm131, %v125, 0.0
    %139 = vadd.xlane.f32.xlu0 %v138
    %v140 = vpop.xlane.xlu0 %139
    %v141 = vsel %vm131, %v126, 0.0
    %142 = vadd.xlane.f32.xlu0 %v141
    %v143 = vpop.xlane.xlu0 %142
    %v144 = vsel %vm131, %v127, 0.0
    %145 = vadd.xlane.f32.xlu0 %v144
    %v146 = vpop.xlane.xlu0 %145
    %v147 = vsel %vm131, %v128, 0.0
    %148 = vadd.xlane.f32.xlu0 %v147
    %v149 = vpop.xlane.xlu0 %148
    %v150 = vsel %vm131, %v129, 0.0
    %151 = vadd.xlane.f32.xlu0 %v150
    %v152 = vpop.xlane.xlu0 %151
    %v153 = vsel %vm131, %v130, 0.0
    %154 = vadd.xlane.f32.xlu0 %v153
    %v155 = vpop.xlane.xlu0 %154
    %v156 = vrot.slane %v134, 4
    %v157 = vmax.f32 %v134, %v156
    %v158 = vrot.slane %v157, 2
    %v159 = vmax.f32 %v157, %v158
    %v160 = vrot.slane %v159, 1
    %v161 = vmax.f32 %v159, %v160
    %v162 = vrot.slane %v137, 4
    %v163 = vmax.f32 %v137, %v162
    %v164 = vrot.slane %v163, 2
    %v165 = vmax.f32 %v163, %v164
    %v166 = vrot.slane %v165, 1
    %v167 = vmax.f32 %v165, %v166
    %v168 = vrot.slane %v140, 4
    %v169 = vmax.f32 %v140, %v168
    %v170 = vrot.slane %v169, 2
    %v171 = vmax.f32 %v169, %v170
    %v172 = vrot.slane %v171, 1
    %v173 = vmax.f32 %v171, %v172
    %v174 = vrot.slane %v143, 4
    %v175 = vmax.f32 %v143, %v174
    %v176 = vrot.slane %v175, 2
    %v177 = vmax.f32 %v175, %v176
    %v178 = vrot.slane %v177, 1
    %v179 = vmax.f32 %v177, %v178
    %v180 = vrot.slane %v146, 4
    %v181 = vmax.f32 %v146, %v180
    %v182 = vrot.slane %v181, 2
    %v183 = vmax.f32 %v181, %v182
    %v184 = vrot.slane %v183, 1
    %v185 = vmax.f32 %v183, %v184
    %v186 = vrot.slane %v149, 4
    %v187 = vmax.f32 %v149, %v186
    %v188 = vrot.slane %v187, 2
    %v189 = vmax.f32 %v187, %v188
    %v190 = vrot.slane %v189, 1
    %v191 = vmax.f32 %v189, %v190
    %v192 = vrot.slane %v152, 4
    %v193 = vmax.f32 %v152, %v192
    %v194 = vrot.slane %v193, 2
    %v195 = vmax.f32 %v193, %v194
    %v196 = vrot.slane %v195, 1
    %v197 = vmax.f32 %v195, %v196
    %v198 = vrot.slane %v155, 4
    %v199 = vmax.f32 %v155, %v198
    %v200 = vrot.slane %v199, 2
    %v201 = vmax.f32 %v199, %v200
    %v202 = vrot.slane %v201, 1
    %v203 = vmax.f32 %v201, %v202
    %v204 = vsub.f32 %v134, %v161
    %v205 = vsub.f32 %v137, %v167
    %v206 = vsub.f32 %v140, %v173
    %v207 = vsub.f32 %v143, %v179
    %v208 = vsub.f32 %v146, %v185
    %v209 = vsub.f32 %v149, %v191
    %v210 = vsub.f32 %v152, %v197
    %v211 = vsub.f32 %v155, %v203
    %v212 = vmul.f32 %v204, 1.442695
    %v213 = vpow.pop %v212
    %v214 = vmul.f32 %v205, 1.442695
    %v215 = vpow.pop %v214
    %v216 = vmul.f32 %v206, 1.442695
    %v217 = vpow.pop %v216
    %v218 = vmul.f32 %v207, 1.442695
    %v219 = vpow.pop %v218
    %v220 = vmul.f32 %v208, 1.442695
    %v221 = vpow.pop %v220
    %v222 = vmul.f32 %v209, 1.442695
    %v223 = vpow.pop %v222
    %v224 = vmul.f32 %v210, 1.442695
    %v225 = vpow.pop %v224
    %v226 = vmul.f32 %v211, 1.442695
    %v227 = vpow.pop %v226
    %v228 = vrot.slane %v213, 4
    %v229 = vadd.f32 %v213, %v228
    %v230 = vrot.slane %v229, 2
    %v231 = vadd.f32 %v229, %v230
    %v232 = vrot.slane %v231, 1
    %v233 = vadd.f32 %v231, %v232
    %v234 = vrot.slane %v215, 4
    %v235 = vadd.f32 %v215, %v234
    %v236 = vrot.slane %v235, 2
    %v237 = vadd.f32 %v235, %v236
    %v238 = vrot.slane %v237, 1
    %v239 = vadd.f32 %v237, %v238
    %v240 = vrot.slane %v217, 4
    %v241 = vadd.f32 %v217, %v240
    %v242 = vrot.slane %v241, 2
    %v243 = vadd.f32 %v241, %v242
    %v244 = vrot.slane %v243, 1
    %v245 = vadd.f32 %v243, %v244
    %v246 = vrot.slane %v219, 4
    %v247 = vadd.f32 %v219, %v246
    %v248 = vrot.slane %v247, 2
    %v249 = vadd.f32 %v247, %v248
    %v250 = vrot.slane %v249, 1
    %v251 = vadd.f32 %v249, %v250
    %v252 = vrot.slane %v221, 4
    %v253 = vadd.f32 %v221, %v252
    %v254 = vrot.slane %v253, 2
    %v255 = vadd.f32 %v253, %v254
    %v256 = vrot.slane %v255, 1
    %v257 = vadd.f32 %v255, %v256
    %v258 = vrot.slane %v223, 4
    %v259 = vadd.f32 %v223, %v258
    %v260 = vrot.slane %v259, 2
    %v261 = vadd.f32 %v259, %v260
    %v262 = vrot.slane %v261, 1
    %v263 = vadd.f32 %v261, %v262
    %v264 = vrot.slane %v225, 4
    %v265 = vadd.f32 %v225, %v264
    %v266 = vrot.slane %v265, 2
    %v267 = vadd.f32 %v265, %v266
    %v268 = vrot.slane %v267, 1
    %v269 = vadd.f32 %v267, %v268
    %v270 = vrot.slane %v227, 4
    %v271 = vadd.f32 %v227, %v270
    %v272 = vrot.slane %v271, 2
    %v273 = vadd.f32 %v271, %v272
    %v274 = vrot.slane %v273, 1
    %v275 = vadd.f32 %v273, %v274
    %v276 = vrcp.pop %v233
    %v277 = vrcp.pop %v239
    %v278 = vrcp.pop %v245
    %v279 = vrcp.pop %v251
    %v280 = vrcp.pop %v257
    %v281 = vrcp.pop %v263
    %v282 = vrcp.pop %v269
    %v283 = vrcp.pop %v275
    %v284 = vmul.f32 %v213, %v276
    %v285 = vmul.f32 %v215, %v277
    %v286 = vmul.f32 %v217, %v278
    %v287 = vmul.f32 %v219, %v279
    %v288 = vmul.f32 %v221, %v280
    %v289 = vmul.f32 %v223, %v281
    %v290 = vmul.f32 %v225, %v282
    %v291 = vmul.f32 %v227, %v283
    %v292 = vld [vmem:[#allocation7] sm:$0xff]
    %v293 = vld [vmem:[#allocation7 + $0x8] sm:$0xff]
    %v294 = vld [vmem:[#allocation7 + $0x10] sm:$0xff]
    %v295 = vld [vmem:[#allocation7 + $0x18] sm:$0xff]
    %v296 = vld [vmem:[#allocation7 + $0x20] sm:$0xff]
    %v297 = vld [vmem:[#allocation7 + $0x28] sm:$0xff]
    %v298 = vld [vmem:[#allocation7 + $0x30] sm:$0xff]
    %v299 = vld [vmem:[#allocation7 + $0x38] sm:$0xff]
    %v300 = vmul.f32 %v284, %v292
    %v301 = vmul.f32 %v285, %v293
    %v302 = vmul.f32 %v286, %v294
    %v303 = vmul.f32 %v287, %v295
    %v304 = vmul.f32 %v288, %v296
    %v305 = vmul.f32 %v289, %v297
    %v306 = vmul.f32 %v290, %v298
    %v307 = vmul.f32 %v291, %v299
    %v308 = vsel %vm131, %v300, 0.0
    %v309 = vrot.slane %v308, 4
    %v310 = vadd.f32 %v308, %v309
    %v311 = vrot.slane %v310, 2
    %v312 = vadd.f32 %v310, %v311
    %v313 = vrot.slane %v312, 1
    %v314 = vadd.f32 %v312, %v313
    %v315 = vsel %vm131, %v301, 0.0
    %v316 = vrot.slane %v315, 4
    %v317 = vadd.f32 %v315, %v316
    %v318 = vrot.slane %v317, 2
    %v319 = vadd.f32 %v317, %v318
    %v320 = vrot.slane %v319, 1
    %v321 = vadd.f32 %v319, %v320
    %v322 = vsel %vm131, %v302, 0.0
    %v323 = vrot.slane %v322, 4
    %v324 = vadd.f32 %v322, %v323
    %v325 = vrot.slane %v324, 2
    %v326 = vadd.f32 %v324, %v325
    %v327 = vrot.slane %v326, 1
    %v328 = vadd.f32 %v326, %v327
    %v329 = vsel %vm131, %v303, 0.0
    %v330 = vrot.slane %v329, 4
    %v331 = vadd.f32 %v329, %v330
    %v332 = vrot.slane %v331, 2
    %v333 = vadd.f32 %v331, %v332
    %v334 = vrot.slane %v333, 1
    %v335 = vadd.f32 %v333, %v334
    %v336 = vsel %vm131, %v304, 0.0
    %v337 = vrot.slane %v336, 4
    %v338 = vadd.f32 %v336, %v337
    %v339 = vrot.slane %v338, 2
    %v340 = vadd.f32 %v338, %v339
    %v341 = vrot.slane %v340, 1
    %v342 = vadd.f32 %v340, %v341
    %v343 = vsel %vm131, %v305, 0.0
    %v344 = vrot.slane %v343, 4
    %v345 = vadd.f32 %v343, %v344
    %v346 = vrot.slane %v345, 2
    %v347 = vadd.f32 %v345, %v346
    %v348 = vrot.slane %v347, 1
    %v349 = vadd.f32 %v347, %v348
    %v350 = vsel %vm131, %v306, 0.0
    %v351 = vrot.slane %v350, 4
    %v352 = vadd.f32 %v350, %v351
    %v353 = vrot.slane %v352, 2
    %v354 = vadd.f32 %v352, %v353
    %v355 = vrot.slane %v354, 1
    %v356 = vadd.f32 %v354, %v355
    %v357 = vsel %vm131, %v307, 0.0
    %v358 = vrot.slane %v357, 4
    %v359 = vadd.f32 %v357, %v358
    %v360 = vrot.slane %v359, 2
    %v361 = vadd.f32 %v359, %v360
    %v362 = vrot.slane %v361, 1
    %v363 = vadd.f32 %v361, %v362
    %vm372 = vcmask 1041409
    %v373 = vsel %vm372, %v321, %v314
    %vm374 = vcmask 1042434
    %v375 = vsel %vm374, %v328, %v373
    %vm376 = vcmask 1043459
    %v377 = vsel %vm376, %v335, %v375
    %vm378 = vcmask 1044484
    %v379 = vsel %vm378, %v342, %v377
    %vm380 = vcmask 1045509
    %v381 = vsel %vm380, %v349, %v379
    %vm382 = vcmask 1046534
    %v383 = vsel %vm382, %v356, %v381
    %vm384 = vcmask 1047559
    %v385 = vsel %vm384, %v363, %v383
    %387 = vst.msk [vmem:[#allocation8] sm:$0xff] %vm131, %v385
    %v396 = vlaneseq
    %v397 = vand.u32 %v396, 127
    %v398 = vlaneseq
    %v399 = vshrl.u32 %v398, 7
    %v400 = vsub.s32 %v397, %v399
    %v401 = vrot.slane %v284, %v400
    %v402 = vlaneseq
    %v403 = vshrl.u32 %v402, 7
    %v404 = vsub.s32 %v397, %v403
    %v405 = vrot.slane %v285, %v404
    %v406 = vlaneseq
    %v407 = vshrl.u32 %v406, 7
    %v408 = vsub.s32 %v397, %v407
    %v409 = vrot.slane %v286, %v408
    %v410 = vlaneseq
    %v411 = vshrl.u32 %v410, 7
    %v412 = vsub.s32 %v397, %v411
    %v413 = vrot.slane %v287, %v412
    %v414 = vlaneseq
    %v415 = vshrl.u32 %v414, 7
    %v416 = vsub.s32 %v397, %v415
    %v417 = vrot.slane %v288, %v416
    %v418 = vlaneseq
    %v419 = vshrl.u32 %v418, 7
    %v420 = vsub.s32 %v397, %v419
    %v421 = vrot.slane %v289, %v420
    %v422 = vlaneseq
    %v423 = vshrl.u32 %v422, 7
    %v424 = vsub.s32 %v397, %v423
    %v425 = vrot.slane %v290, %v424
    %v426 = vlaneseq
    %v427 = vshrl.u32 %v426, 7
    %v428 = vsub.s32 %v397, %v427
    %v429 = vrot.slane %v291, %v428
    %v430 = vsel %vm372, %v405, %v401
    %v431 = vsel %vm374, %v409, %v430
    %v432 = vsel %vm376, %v413, %v431
    %v433 = vsel %vm378, %v417, %v432
    %v434 = vsel %vm380, %v421, %v433
    %v435 = vsel %vm382, %v425, %v434
    %v436 = vsel %vm384, %v429, %v435
    %vm438 = vcmask 64512
    %439 = vst.msk [vmem:[#allocation9] sm:$0xff] %vm438, %v436
    // Predicated region
    $region26: #{tpu_custom_call.1} parent=1 // pred_check
      _
    $region27: #{tpu_custom_call.1} parent=1 // pred_check_branch
      %441 = sbr.rel (0) target = $region29
    $region28: #{tpu_custom_call.1} parent=1 // pred_region
      %s443 = ssub.s32 128, 128
      %444 = vsyncadd [#allocation4], %s443
      %s446 = sshll.u32 [#allocation8], 4
      %s447 = int_to_ptr.vmem [resolvable:$true] %s446
      %449 = dma.vmem_to_hbm [thread:$0]  %s447, 128, %s3, [#allocation4]
    $region29: #{tpu_custom_call.1} parent=1 // pred_fallthru
      _
    // Predicated region
    $region30: #{tpu_custom_call.1} parent=1 // pred_check
      _
    $region31: #{tpu_custom_call.1} parent=1 // pred_check_branch
      %451 = sbr.rel (0) target = $region33
    $region32: #{tpu_custom_call.1} parent=1 // pred_region
      %s453 = ssub.s32 128, 128
      %454 = vsyncadd [#allocation10], %s453
      %s456 = sshll.u32 [#allocation9], 4
      %s457 = int_to_ptr.vmem [resolvable:$true] %s456
      %459 = dma.vmem_to_hbm [thread:$0]  %s457, 128, %s4, [#allocation10]
    $region33: #{tpu_custom_call.1} parent=1 // pred_fallthru
      _
    // Predicated region
    $region34: #{tpu_custom_call.1} parent=1 // pred_check
      _
    $region35: #{tpu_custom_call.1} parent=1 // pred_check_branch
      %461 = sbr.rel (0) target = $region37
    $region36: #{tpu_custom_call.1} parent=1 // pred_region
      %462 = dma.done [#allocation4], 128
    $region37: #{tpu_custom_call.1} parent=1 // pred_fallthru
      _
    // Predicated region
    $region38: #{tpu_custom_call.1} parent=1 // pred_check
      _
    $region39: #{tpu_custom_call.1} parent=1 // pred_check_branch
      %464 = sbr.rel (0) target = $region41
    $region40: #{tpu_custom_call.1} parent=1 // pred_region
      %465 = dma.done [#allocation10], 128
    $region41: #{tpu_custom_call.1} parent=1 // pred_fallthru
      _
    %466 = vsyncpa [#allocation3], 1
    %467 = vsyncpa [#allocation6], 1
    %468 = vsyncpa [#allocation4], 1
    %469 = vsyncpa [#allocation10], 1

</llo_original>
